<compile_context>
chip_gen: v7x
topology: tpu7x:2x2x1
jax: 0.10.0
libtpu: 0.0.40
codegen_flags: <defaults>
</compile_context>

<pallas_src>
import math
from functools import partial

import jax
import jax.numpy as jnp
from jax import lax
from jax.experimental import pallas as pl
from jax.experimental.pallas import tpu as pltpu


def ffn_kernel(w1t_ref, b1_ref, xf_ref, o_ref, *, tk):
    # w1t_ref: (tk, E) bf16  K-slice of linear1 weight in (in, out) layout
    # b1_ref : (1, E)  f32   linear1 bias
    # xf_ref : (tb, F) f32   full-width x rows (matmul source + residual), resident over k
    # o_ref  : (tb, E) f32   output tile; doubles as the matmul accumulator (index (i,0))
    k = pl.program_id(1)
    nk = pl.num_programs(1)

    @pl.when(k == 0)
    def _():
        # Seed the accumulator with the bias: saves a zero-fill and removes the
        # bias add from the epilogue.
        o_ref[...] = jnp.broadcast_to(b1_ref[...], o_ref.shape)

    # Slice the K-chunk straight out of the resident f32 x tile and cast to
    # bf16 on the fly (no second bf16 copy of x streamed from HBM).
    start = pl.multiple_of(k * tk, tk)
    xk = xf_ref[:, pl.ds(start, tk)].astype(jnp.bfloat16)
    # bf16 x bf16 -> f32 accumulate on the MXU, directly into the output tile.
    o_ref[...] += jnp.dot(xk, w1t_ref[...], preferred_element_type=jnp.float32)

    @pl.when(k == nk - 1)
    def _():
        h = jnp.maximum(o_ref[...], 0.0)                   # bias already folded in -> ReLU
        r = h + xf_ref[...]                                # residual add (f32)
        mean = jnp.mean(r, axis=-1, keepdims=True)
        d = r - mean
        var = jnp.mean(d * d, axis=-1, keepdims=True)      # population variance (np.std)
        o_ref[...] = (d * lax.rsqrt(var + 1e-4)).astype(o_ref.dtype)


def prepare_params(w1, b1):
    """One-time parameter prep (NOT per forward call): transpose linear1 weight
    from PyTorch (out, in) to (in, out) layout and cast to bf16 for the MXU."""
    return jnp.transpose(w1).astype(jnp.bfloat16), b1.reshape(1, -1).astype(jnp.float32)


def _tpu_generation():
    try:
        kind = jax.devices()[0].device_kind.lower()
    except Exception:
        return None
    for tag, gen in (("v7", 7), ("7x", 7), ("v6", 6), ("v5", 5), ("v4", 4)):
        if tag in kind:
            return gen
    return None


def _largest_divisor_tile(n, candidates):
    for c in candidates:
        if c <= n and n % c == 0:
            return c
    return n


def feed_forward(x, w1t_bf16, b1_2d, *, tb=None, tk=None):
    """x: (B, F) f32; w1t_bf16: (F, E) bf16 (pre-transposed); b1_2d: (1, E) f32.
    Requires E == F (residual broadcast in the reference)."""
    B, F = x.shape
    Fin, E = w1t_bf16.shape
    assert Fin == F
    assert E == F, "residual add in the reference requires embedding == features"

    gen = _tpu_generation()
    is_v7 = (gen == 7)

    # Generation-specific VMEM working-set budget and scoped limit.
    vmem_budget = (40 << 20) if is_v7 else (96 << 20)
    vmem_limit = (48 << 20) if is_v7 else (100 << 20)

    # Batch tile: whole batch when small.  On v7x split the batch across the
    # two TensorCores (batch axis is "parallel") once B is big enough.
    if tb is None:
        if is_v7 and B >= 32:
            cap = max(B // 2, 8)
        else:
            cap = B if B <= 256 else 256
        if B <= cap:
            tb = B
        else:
            tb = _largest_divisor_tile(
                B, tuple(c for c in (256, 128, 64, 32, 16, 8) if c <= cap))

    def vmem_bytes(tk_):
        # double-buffered: weight (bf16) + bias (f32) + xf (f32) + out/acc (f32)
        return (2 * tk_ * E * 2) + (2 * E * 4) + (2 * tb * F * 4) + (2 * tb * E * 4)

    # Weight residency first: nk == 1 -> weight DMAed from HBM exactly once.
    if tk is None:
        if vmem_bytes(F) <= vmem_budget:
            tk = F
        else:
            cands = (2048, 1024, 512, 256, 128) if gen in (6, 7) else (1024, 512, 256, 128)
            fitting = tuple(c for c in cands if vmem_bytes(c) <= vmem_budget)
            tk = _largest_divisor_tile(F, fitting) if fitting else 128
    assert B % tb == 0 and F % tk == 0
    nb, nk = B // tb, F // tk

    # Weight BlockSpec; deepen its pipeline on v5e/v6e only when the weight is
    # actually re-streamed (nk > 1) and a third buffer fits.
    w_spec = pl.BlockSpec((tk, E), lambda i, k: (k, 0))
    if nk > 1 and not is_v7 and vmem_bytes(tk) + tk * E * 2 <= vmem_budget:
        try:
            w_spec = pl.BlockSpec((tk, E), lambda i, k: (k, 0),
                                  pipeline_mode=pl.Buffered(3))
        except TypeError:
            pass  # older API: fall back to default double-buffering

    return pl.pallas_call(
        partial(ffn_kernel, tk=tk),
        out_shape=jax.ShapeDtypeStruct((B, E), jnp.float32),
        grid_spec=pltpu.PrefetchScalarGridSpec(
            num_scalar_prefetch=0,
            grid=(nb, nk),                                    # reduction axis last
            in_specs=[
                w_spec,                                       # weight K-slice (bf16)
                pl.BlockSpec((1, E), lambda i, k: (0, 0)),    # bias (f32)
                pl.BlockSpec((tb, F), lambda i, k: (i, 0)),   # x rows (f32), resident over k
            ],
            out_specs=pl.BlockSpec((tb, E), lambda i, k: (i, 0)),  # output == accumulator
        ),
        compiler_params=pltpu.CompilerParams(
            dimension_semantics=("parallel", "arbitrary"),
            vmem_limit_bytes=vmem_limit,
        ),
    )(w1t_bf16, b1_2d, x)


def feed_forward_ref(x, w1, b1):
    """Plain-JAX (f32) reference mirroring the PyTorch forward exactly."""
    h = jnp.maximum(x @ w1.T + b1, 0.0)
    r = h + x
    mean = jnp.mean(r, axis=-1, keepdims=True)
    std = jnp.std(r, axis=-1, keepdims=True)          # population std (np.std)
    return (r - mean) / jnp.sqrt(std * std + 0.0001)


if __name__ == "__main__":
    # Small shapes consistent with the module: features == embedding == 128.
    B, FEATURES, EMBEDDING = 16, 128, 128

    key = jax.random.PRNGKey(0)
    kx, kw1, kb1, kw2, kb2 = jax.random.split(key, 5)

    # Deterministic init mimicking nn.Linear's uniform(-1/sqrt(in), 1/sqrt(in)).
    bound1 = 1.0 / math.sqrt(FEATURES)
    w1 = jax.random.uniform(kw1, (EMBEDDING, FEATURES), jnp.float32, -bound1, bound1)
    b1 = jax.random.uniform(kb1, (EMBEDDING,), jnp.float32, -bound1, bound1)

    # linear2 params exist in __init__ but are unused in forward().
    bound2 = 1.0 / math.sqrt(EMBEDDING)
    w2 = jax.random.uniform(kw2, (FEATURES, EMBEDDING), jnp.float32, -bound2, bound2)
    b2 = jax.random.uniform(kb2, (FEATURES,), jnp.float32, -bound2, bound2)

    x = jax.random.normal(kx, (B, FEATURES), jnp.float32)

    # One-time weight layout/dtype prep (hoisted out of the forward path).
    w1t_bf16, b1_2d = prepare_params(w1, b1)

    out = feed_forward(x, w1t_bf16, b1_2d)
    out = jax.block_until_ready(out)

    ref = feed_forward_ref(x, w1, b1)
    assert out.shape == (B, FEATURES)
    max_err = float(jnp.max(jnp.abs(out - ref)))
    # bf16 MXU operands with f32 accumulation -> ~1e-3 level differences vs f32 ref.
    assert jnp.allclose(out, ref, atol=2e-2, rtol=2e-2), \
        f"mismatch vs reference (max abs err {max_err})"

    print("KERNEL_OK")
</pallas_src>

<mosaic_0001>
module attributes {stable_mosaic.version = 11 : i64} {
  func.func @ffn_kernel(%arg0: i32, %arg1: i32, %arg2: memref<128x128xbf16, #tpu.memory_space<vmem>>, %arg3: memref<1x128xf32, #tpu.memory_space<vmem>>, %arg4: memref<16x128xf32, #tpu.memory_space<vmem>>, %arg5: memref<16x128xf32, #tpu.memory_space<vmem>>) attributes {dimension_semantics = [#tpu.dimension_semantics<parallel>, #tpu.dimension_semantics<arbitrary>], iteration_bounds = array<i64: 1, 1>, scalar_prefetch = 0 : i64, scratch_operands = 0 : i64, tpu.core_type = #tpu.core_type<tc>, window_params = [{transform_indices = @transform_0, window_bounds = array<i64: 128, 128>}, {pipeline_mode = #tpu.pipeline_mode<synchronous>, transform_indices = @transform_1, window_bounds = array<i64: 1, 128>}, {transform_indices = @transform_2, window_bounds = array<i64: 16, 128>}, {transform_indices = @transform_3, window_bounds = array<i64: 16, 128>}]} {
    %c0_i32 = arith.constant 0 : i32
    %0 = arith.cmpi eq, %arg1, %c0_i32 : i32
    %1 = arith.extui %0 : i1 to i32
    %c0_i32_0 = arith.constant 0 : i32
    %2 = arith.cmpi ne, %1, %c0_i32_0 : i32
    scf.if %2 {
      %c0_9 = arith.constant 0 : index
      %c0_10 = arith.constant 0 : index
      %16 = vector.load %arg3[%c0_9, %c0_10] : memref<1x128xf32, #tpu.memory_space<vmem>>, vector<1x128xf32>
      %17 = vector.shape_cast %16 : vector<1x128xf32> to vector<1x128xf32>
      %18 = vector.broadcast %17 : vector<1x128xf32> to vector<16x128xf32>
      %c0_11 = arith.constant 0 : index
      %c0_12 = arith.constant 0 : index
      %19 = vector.load %arg5[%c0_11, %c0_12] : memref<16x128xf32, #tpu.memory_space<vmem>>, vector<16x128xf32>
      tpu.vector_store %arg5[%c0_11, %c0_12], %18 {strides = array<i32>} : memref<16x128xf32, #tpu.memory_space<vmem>>, vector<16x128xf32>,
    } else {
    }
    %c128_i32 = arith.constant 128 : i32
    %3 = arith.muli %arg1, %c128_i32 : i32
    %4 = tpu.assume_multiple %3, 128 : i32
    %c0 = arith.constant 0 : index
    %5 = arith.index_cast %4 : i32 to index
    %6 = vector.load %arg4[%c0, %5] : memref<16x128xf32, #tpu.memory_space<vmem>>, vector<16x128xf32>
    %7 = arith.truncf %6 : vector<16x128xf32> to vector<16x128xbf16>
    %c0_1 = arith.constant 0 : index
    %c0_2 = arith.constant 0 : index
    %8 = vector.load %arg5[%c0_1, %c0_2] : memref<16x128xf32, #tpu.memory_space<vmem>>, vector<16x128xf32>
    %c0_3 = arith.constant 0 : index
    %c0_4 = arith.constant 0 : index
    %9 = vector.load %arg2[%c0_3, %c0_4] : memref<128x128xbf16, #tpu.memory_space<vmem>>, vector<128x128xbf16>
    %cst = arith.constant dense<0.000000e+00> : vector<16x128xf32>
    %10 = tpu.matmul %7, %9, %cst {dimension_numbers = #tpu.dot_dimension_numbers<[1], [0], [0], [1], [0, 0, 1, 1], [], []>} : vector<16x128xbf16>, vector<128x128xbf16>, vector<16x128xf32> -> vector<16x128xf32>
    %11 = arith.addf %8, %10 : vector<16x128xf32>
    %c0_5 = arith.constant 0 : index
    %c0_6 = arith.constant 0 : index
    %12 = vector.load %arg5[%c0_5, %c0_6] : memref<16x128xf32, #tpu.memory_space<vmem>>, vector<16x128xf32>
    tpu.vector_store %arg5[%c0_5, %c0_6], %11 {strides = array<i32>} : memref<16x128xf32, #tpu.memory_space<vmem>>, vector<16x128xf32>,
    %c0_i32_7 = arith.constant 0 : i32
    %13 = arith.cmpi eq, %arg1, %c0_i32_7 : i32
    %14 = arith.extui %13 : i1 to i32
    %c0_i32_8 = arith.constant 0 : i32
    %15 = arith.cmpi ne, %14, %c0_i32_8 : i32
    scf.if %15 {
      %c0_9 = arith.constant 0 : index
      %c0_10 = arith.constant 0 : index
      %16 = vector.load %arg5[%c0_9, %c0_10] : memref<16x128xf32, #tpu.memory_space<vmem>>, vector<16x128xf32>
      %cst_11 = arith.constant 0.000000e+00 : f32
      %17 = vector.broadcast %cst_11 : f32 to vector<16x128xf32>
      %18 = arith.maximumf %16, %17 : vector<16x128xf32>
      %c0_12 = arith.constant 0 : index
      %c0_13 = arith.constant 0 : index
      %19 = vector.load %arg4[%c0_12, %c0_13] : memref<16x128xf32, #tpu.memory_space<vmem>>, vector<16x128xf32>
      %20 = arith.addf %18, %19 : vector<16x128xf32>
      %cst_14 = arith.constant dense<0.000000e+00> : vector<16xf32>
      %21 = vector.multi_reduction <add>, %20, %cst_14 [1] : vector<16x128xf32> to vector<16xf32>
      %22 = vector.shape_cast %21 : vector<16xf32> to vector<16x1xf32>
      %cst_15 = arith.constant 1.280000e+02 : f32
      %23 = vector.broadcast %cst_15 : f32 to vector<16x1xf32>
      %24 = arith.divf %22, %23 : vector<16x1xf32>
      %25 = vector.broadcast %24 : vector<16x1xf32> to vector<16x128xf32>
      %26 = arith.subf %20, %25 : vector<16x128xf32>
      %27 = arith.mulf %26, %26 : vector<16x128xf32>
      %cst_16 = arith.constant dense<0.000000e+00> : vector<16xf32>
      %28 = vector.multi_reduction <add>, %27, %cst_16 [1] : vector<16x128xf32> to vector<16xf32>
      %29 = vector.shape_cast %28 : vector<16xf32> to vector<16x1xf32>
      %cst_17 = arith.constant 1.280000e+02 : f32
      %30 = vector.broadcast %cst_17 : f32 to vector<16x1xf32>
      %31 = arith.divf %29, %30 : vector<16x1xf32>
      %cst_18 = arith.constant 9.99999974E-5 : f32
      %32 = vector.broadcast %cst_18 : f32 to vector<16x1xf32>
      %33 = arith.addf %31, %32 : vector<16x1xf32>
      %34 = math.rsqrt %33 : vector<16x1xf32>
      %35 = vector.broadcast %34 : vector<16x1xf32> to vector<16x128xf32>
      %36 = arith.mulf %26, %35 : vector<16x128xf32>
      %c0_19 = arith.constant 0 : index
      %c0_20 = arith.constant 0 : index
      %37 = vector.load %arg5[%c0_19, %c0_20] : memref<16x128xf32, #tpu.memory_space<vmem>>, vector<16x128xf32>
      tpu.vector_store %arg5[%c0_19, %c0_20], %36 {strides = array<i32>} : memref<16x128xf32, #tpu.memory_space<vmem>>, vector<16x128xf32>,
    } else {
    }
    return
  }
  func.func @transform_0(%arg0: i32, %arg1: i32) -> (i32, i32) {
    %c0_i32 = arith.constant 0 : i32
    %c0_i32_0 = arith.constant 0 : i32
    return %arg1, %c0_i32 : i32, i32
  }
  func.func @transform_1(%arg0: i32, %arg1: i32) -> (i32, i32) {
    %c0_i32 = arith.constant 0 : i32
    %c0_i32_0 = arith.constant 0 : i32
    %c0_i32_1 = arith.constant 0 : i32
    return %c0_i32, %c0_i32_0 : i32, i32
  }
  func.func @transform_2(%arg0: i32, %arg1: i32) -> (i32, i32) {
    %c0_i32 = arith.constant 0 : i32
    %c0_i32_0 = arith.constant 0 : i32
    return %arg0, %c0_i32 : i32, i32
  }
  func.func @transform_3(%arg0: i32, %arg1: i32) -> (i32, i32) {
    %c0_i32 = arith.constant 0 : i32
    %c0_i32_0 = arith.constant 0 : i32
    return %arg0, %c0_i32 : i32, i32
  }
}

</mosaic_0001>

<llo_original>
// kernel: tpu_custom_call.1
$region0: #{tpu_custom_call.1}
  #allocation0 [shape = 'u32[]', space=smem, size = 0x4, offset = 0x4, fixed_abs, tag = 'smem constant byte address 0x4 - core index']
  #allocation1 [shape = 'u32[144,128]{1,0:T(1,128)}', space=vmem, size = 0x12000, scoped, tag = 'internal scratch']
  %s0 = inlined_call_operand.hbm [shape: bf16[128,128], index: 0, kind: input, shape index: {}]
  %s1 = inlined_call_operand.hbm [shape: f32[1,128], index: 1, kind: input, shape index: {}]
  %s2 = inlined_call_operand.hbm [shape: f32[16,128], index: 2, kind: input, shape index: {}]
  %s3 = inlined_call_operand.hbm [shape: f32[16,128], index: 3, kind: output, shape index: {}]
  %s4 = sld [smem:[#allocation0]]
  $region42: #{tpu_custom_call.1} parent=0
    _
  %s6 = ssub.s32 1, %s4
  %s7 = scalar_select 0, %s6, %s4
  $region1: #{tpu_custom_call.1} parent=0
    #allocation2 [shape = 'u8[32768]{0}', space=vmem, size = 0x8000, scoped, tag = 'input window, operand 0, single buffered']
    #allocation3 [shape = 's32[1]{0}', space=sflag, size = 0x4, scoped, tag = 'scoped memory for tpu_custom_call.1']
    #allocation4 [shape = 's32[1]{0}', space=sflag, size = 0x4, scoped, tag = 'scoped memory for tpu_custom_call.1']
    #allocation5 [shape = 'u8[512]{0}', space=vmem, size = 0x400, scoped, tag = 'input window, operand 1, single buffered']
    #allocation6 [shape = 's32[1]{0}', space=sflag, size = 0x4, scoped, tag = 'scoped memory for tpu_custom_call.1']
    #allocation7 [shape = 'u8[8192]{0}', space=vmem, size = 0x2000, scoped, tag = 'input window, operand 2, single buffered']
    #allocation8 [shape = 'u8[8192]{0}', space=vmem, size = 0x2000, scoped, tag = 'output window, operand 0, single buffered']
    %8 = vsyncpa [#allocation3], 0
    %9 = vsyncpa [#allocation6], 0
    %10 = vsyncpa [#allocation4], 0
    // Predicated region
    $region2: #{tpu_custom_call.1} parent=1 // pred_check
      _
    $region3: #{tpu_custom_call.1} parent=1 // pred_check_branch
      %12 = sbr.rel (0) target = $region5
    $region4: #{tpu_custom_call.1} parent=1 // pred_region
      %s14 = ssub.s32 1024, 1024
      %15 = vsyncadd [#allocation3], %s14
      %s16 = sshll.u32 [#allocation2], 4
      %s17 = int_to_ptr.vmem [resolvable:$true] %s16
      %22 = dma.hbm_to_vmem [thread:$0]  %s0, 1024, %s17, [#allocation3], 64, 64, 4
    $region5: #{tpu_custom_call.1} parent=1 // pred_fallthru
      _
    // Predicated region
    $region6: #{tpu_custom_call.1} parent=1 // pred_check
      _
    $region7: #{tpu_custom_call.1} parent=1 // pred_check_branch
      %24 = sbr.rel (0) target = $region9
    $region8: #{tpu_custom_call.1} parent=1 // pred_region
      %s26 = ssub.s32 16, 16
      %27 = vsyncadd [#allocation6], %s26
      %s29 = sshll.u32 [#allocation5], 4
      %s30 = int_to_ptr.vmem [resolvable:$true] %s29
      %32 = dma.hbm_to_vmem [thread:$0]  %s1, 16, %s30, [#allocation6]
    $region9: #{tpu_custom_call.1} parent=1 // pred_fallthru
      _
    // Predicated region
    $region10: #{tpu_custom_call.1} parent=1 // pred_check
      _
    $region11: #{tpu_custom_call.1} parent=1 // pred_check_branch
      %34 = sbr.rel (0) target = $region13
    $region12: #{tpu_custom_call.1} parent=1 // pred_region
      %s36 = ssub.s32 256, 256
      %37 = vsyncadd [#allocation6], %s36
      %s38 = sshll.u32 [#allocation7], 4
      %s39 = int_to_ptr.vmem [resolvable:$true] %s38
      %44 = dma.hbm_to_vmem [thread:$0]  %s2, 256, %s39, [#allocation6], 128, 128, 8
    $region13: #{tpu_custom_call.1} parent=1 // pred_fallthru
      _
    // Predicated region
    $region14: #{tpu_custom_call.1} parent=1 // pred_check
      _
    $region15: #{tpu_custom_call.1} parent=1 // pred_check_branch
      %46 = sbr.rel (0) target = $region17
    $region16: #{tpu_custom_call.1} parent=1 // pred_region
      %47 = dma.done [#allocation3], 1024
    $region17: #{tpu_custom_call.1} parent=1 // pred_fallthru
      _
    // Predicated region
    $region18: #{tpu_custom_call.1} parent=1 // pred_check
      _
    $region19: #{tpu_custom_call.1} parent=1 // pred_check_branch
      %49 = sbr.rel (0) target = $region21
    $region20: #{tpu_custom_call.1} parent=1 // pred_region
      %50 = dma.done [#allocation6], 16
    $region21: #{tpu_custom_call.1} parent=1 // pred_fallthru
      _
    // Predicated region
    $region22: #{tpu_custom_call.1} parent=1 // pred_check
      _
    $region23: #{tpu_custom_call.1} parent=1 // pred_check_branch
      %52 = sbr.rel (0) target = $region25
    $region24: #{tpu_custom_call.1} parent=1 // pred_region
      %53 = dma.done [#allocation6], 256
    $region25: #{tpu_custom_call.1} parent=1 // pred_fallthru
      _
    %p55 = scmp.eq.s32.totalorder 0, 0
    // Predicated region
    $region26: #{tpu_custom_call.1} parent=1 // pred_check
      %p56 = pneg %p55
    $region27: #{tpu_custom_call.1} parent=1 // pred_check_branch
      %58 = sbr.rel (%p56) target = $region29
    $region28: #{tpu_custom_call.1} parent=1 // pred_region
      %v59 = vld [vmem:[#allocation5] sm:$0x1]
      %v61 = vlaneseq
      %v62 = vshrl.u32 %v61, 7
      %v63 = vsub.s32 0, %v62
      %v64 = vrot.slane %v59, %v63
      %66 = vst [vmem:[#allocation8] sm:$0xff] %v64
      %67 = vst [vmem:[#allocation8 + $0x8] sm:$0xff] %v64
    $region29: #{tpu_custom_call.1} parent=1 // pred_fallthru
      _
    %s68 = smul.u32 0, 128
    %s69 = sshra.s32 %s68, 7
    %s70 = sand.u32 %s68, 127
    %s71 = scalar_lea.vmem [#allocation7], %s69
    %v72 = vld [vmem:[%s71] sm:$0xff]
    %v73 = vld [vmem:[%s71 + $0x8] sm:$0xff]
    %v74 = vpack.c.bf16 %v73, %v72
    %v75 = vld [vmem:[#allocation8] sm:$0xff]
    %v76 = vld [vmem:[#allocation8 + $0x8] sm:$0xff]
    %v77 = vld [vmem:[#allocation2] sm:$0xf]
    %v78 = vld [vmem:[#allocation2 + $0x4] sm:$0xf]
    %v79 = vld [vmem:[#allocation2 + $0x8] sm:$0xf]
    %v80 = vld [vmem:[#allocation2 + $0xc] sm:$0xf]
    %v81 = vld [vmem:[#allocation2 + $0x10] sm:$0xf]
    %v82 = vld [vmem:[#allocation2 + $0x14] sm:$0xf]
    %v83 = vld [vmem:[#allocation2 + $0x18] sm:$0xf]
    %v84 = vld [vmem:[#allocation2 + $0x1c] sm:$0xf]
    %v85 = vld [vmem:[#allocation2 + $0x20] sm:$0xf]
    %v86 = vld [vmem:[#allocation2 + $0x24] sm:$0xf]
    %v87 = vld [vmem:[#allocation2 + $0x28] sm:$0xf]
    %v88 = vld [vmem:[#allocation2 + $0x2c] sm:$0xf]
    %v89 = vld [vmem:[#allocation2 + $0x30] sm:$0xf]
    %v90 = vld [vmem:[#allocation2 + $0x34] sm:$0xf]
    %v91 = vld [vmem:[#allocation2 + $0x38] sm:$0xf]
    %v92 = vld [vmem:[#allocation2 + $0x3c] sm:$0xf]
    %v109 = vunpack.c.l.b16 %v77
    %v110 = vunpack.c.l.b16 %v78
    %v111 = vunpack.c.l.b16 %v79
    %v112 = vunpack.c.l.b16 %v80
    %v113 = vunpack.c.l.b16 %v81
    %v114 = vunpack.c.l.b16 %v82
    %v115 = vunpack.c.l.b16 %v83
    %v116 = vunpack.c.l.b16 %v84
    %v117 = vunpack.c.l.b16 %v85
    %v118 = vunpack.c.l.b16 %v86
    %v119 = vunpack.c.l.b16 %v87
    %v120 = vunpack.c.l.b16 %v88
    %v121 = vunpack.c.l.b16 %v89
    %v122 = vunpack.c.l.b16 %v90
    %v123 = vunpack.c.l.b16 %v91
    %v124 = vunpack.c.l.b16 %v92
    %v125 = vpack.c.b16 %v110, %v109
    %v126 = vpack.c.b16 %v112, %v111
    %v127 = vpack.c.b16 %v114, %v113
    %v128 = vpack.c.b16 %v116, %v115
    %v129 = vpack.c.b16 %v118, %v117
    %v130 = vpack.c.b16 %v120, %v119
    %v131 = vpack.c.b16 %v122, %v121
    %v132 = vpack.c.b16 %v124, %v123
    %141 = vmatprep.subr.bf16.mxu0 0
    %142 = vmatpush1.bf16.msra.mxu0 %v125
    %143 = vmatprep.subr.bf16.mxu0 0
    %144 = vmatpush1.bf16.msra.mxu0 %v126
    %145 = vmatprep.subr.bf16.mxu0 0
    %146 = vmatpush1.bf16.msra.mxu0 %v127
    %147 = vmatprep.subr.bf16.mxu0 0
    %148 = vmatpush1.bf16.msra.mxu0 %v128
    %149 = vmatprep.subr.bf16.mxu0 0
    %150 = vmatpush1.bf16.msra.mxu0 %v129
    %151 = vmatprep.subr.bf16.mxu0 0
    %152 = vmatpush1.bf16.msra.mxu0 %v130
    %153 = vmatprep.subr.bf16.mxu0 0
    %154 = vmatpush1.bf16.msra.mxu0 %v131
    %155 = vmatprep.subr.bf16.mxu0 0
    %156 = vmatpush1.bf16.msra.mxu0 %v132
    %157 = vmatprep.subr.bf16.mxu0 0
    %158 = vmatpush1.bf16.msra.mxu0 0
    %159 = vmatprep.subr.bf16.mxu0 0
    %160 = vmatpush1.bf16.msra.mxu0 0
    %161 = vmatprep.subr.bf16.mxu0 0
    %162 = vmatpush1.bf16.msra.mxu0 0
    %163 = vmatprep.subr.bf16.mxu0 0
    %164 = vmatpush1.bf16.msra.mxu0 0
    %165 = vmatprep.subr.bf16.mxu0 0
    %166 = vmatpush1.bf16.msra.mxu0 0
    %167 = vmatprep.subr.bf16.mxu0 0
    %168 = vmatpush1.bf16.msra.mxu0 0
    %169 = vmatprep.subr.bf16.mxu0 0
    %170 = vmatpush1.bf16.msra.mxu0 0
    %171 = vmatprep.subr.bf16.mxu0 0
    %172 = vmatpush1.bf16.msra.mxu0 0
    %173 = vmatprep.mubr.bf16.mxu0 0
    %174 = vmatmul.mubr.bf16.gmra.mrb[0].mxu0 %v74
    %v175 = vpop.f32.mrb[0].mxu0
    %v176 = vadd.f32 0.0, %v175
    %v177 = vpop.f32.mrb[0].mxu0
    %v178 = vpop.f32.mrb[0].mxu0
    %v179 = vadd.f32 0.0, %v178
    %v180 = vpop.f32.mrb[0].mxu0
    %181 = vdwg.mxu0
    %v182 = vadd.f32 %v75, %v176
    %v183 = vadd.f32 %v76, %v179
    %184 = vst [vmem:[#allocation8] sm:$0xff] %v182
    %185 = vst [vmem:[#allocation8 + $0x8] sm:$0xff] %v183
    // Predicated region
    $region30: #{tpu_custom_call.1} parent=1 // pred_check
      %p186 = pneg %p55
    $region31: #{tpu_custom_call.1} parent=1 // pred_check_branch
      %188 = sbr.rel (%p186) target = $region33
    $region32: #{tpu_custom_call.1} parent=1 // pred_region
      %v189 = vld [vmem:[#allocation8] sm:$0xff]
      %v190 = vld [vmem:[#allocation8 + $0x8] sm:$0xff]
      %v191 = vmax.f32 %v189, 0.0
      %v192 = vmax.f32 %v190, 0.0
      %v193 = vld [vmem:[#allocation7] sm:$0xff]
      %v194 = vld [vmem:[#allocation7 + $0x8] sm:$0xff]
      %v195 = vadd.f32 %v191, %v193
      %v196 = vadd.f32 %v192, %v194
      %197 = vadd.xlane.f32.xlu0 %v195
      %v198 = vpop.xlane.xlu0 %197
      %199 = vadd.xlane.f32.xlu0 %v196
      %v200 = vpop.xlane.xlu0 %199
      %v201 = vrcp.pop 128.0
      %v202 = vmul.f32 %v198, %v201
      %v203 = vmul.f32 %v200, %v201
      %v204 = vsub.f32 %v195, %v202
      %v205 = vsub.f32 %v196, %v203
      %v206 = vmul.f32 %v204, %v204
      %v207 = vmul.f32 %v205, %v205
      %208 = vadd.xlane.f32.xlu0 %v206
      %v209 = vpop.xlane.xlu0 %208
      %210 = vadd.xlane.f32.xlu0 %v207
      %v211 = vpop.xlane.xlu0 %210
      %v212 = vmul.f32 %v209, %v201
      %v213 = vmul.f32 %v211, %v201
      %v214 = vadd.f32 %v212, 0.0001
      %v215 = vadd.f32 %v213, 0.0001
      %v216 = vrsqrt.pop %v214
      %v217 = vrsqrt.pop %v215
      %v218 = vmul.f32 %v204, %v216
      %v219 = vmul.f32 %v205, %v217
      %220 = vst [vmem:[#allocation8] sm:$0xff] %v218
      %221 = vst [vmem:[#allocation8 + $0x8] sm:$0xff] %v219
    $region33: #{tpu_custom_call.1} parent=1 // pred_fallthru
      _
    // Predicated region
    $region34: #{tpu_custom_call.1} parent=1 // pred_check
      _
    $region35: #{tpu_custom_call.1} parent=1 // pred_check_branch
      %223 = sbr.rel (0) target = $region37
    $region36: #{tpu_custom_call.1} parent=1 // pred_region
      %s225 = ssub.s32 256, 256
      %226 = vsyncadd [#allocation4], %s225
      %s227 = sshll.u32 [#allocation8], 4
      %s228 = int_to_ptr.vmem [resolvable:$true] %s227
      %233 = dma.vmem_to_hbm [thread:$0]  %s228, 256, %s3, [#allocation4], 128, 128, 8
    $region37: #{tpu_custom_call.1} parent=1 // pred_fallthru
      _
    // Predicated region
    $region38: #{tpu_custom_call.1} parent=1 // pred_check
      _
    $region39: #{tpu_custom_call.1} parent=1 // pred_check_branch
      %235 = sbr.rel (0) target = $region41
    $region40: #{tpu_custom_call.1} parent=1 // pred_region
      %236 = dma.done [#allocation4], 256
    $region41: #{tpu_custom_call.1} parent=1 // pred_fallthru
      _
    %237 = vsyncpa [#allocation3], 1
    %238 = vsyncpa [#allocation6], 1
    %239 = vsyncpa [#allocation4], 1

</llo_original>
